<compile_context>
chip_gen: v5e
topology: v5e:2x2
jax: 0.10.0
libtpu: 0.0.40
codegen_flags: <defaults>
</compile_context>

<pallas_src>
import math
from functools import partial

import jax
import jax.numpy as jnp
from jax import lax
from jax.experimental import pallas as pl
from jax.experimental.pallas import tpu as pltpu


# ----------------------------------------------------------------------------
# Kernel: NB batch images (stacked as NB*C sublane rows) per grid step.
# Layout: (NB*C, H*W) tiles -- batch*channel on sublanes, H*W (lane-dense,
# multiple of 128) on the lane axis.
# ----------------------------------------------------------------------------
def _grapher_kernel(x_ref, w1_ref, b1_ref, w2a_ref, w2b_ref, b2_ref,
                    w3_ref, b3_ref, o_ref, *, H, W, K):
    x = x_ref[...]                         # (R, HW) f32, R = NB*C
    R, HW = x.shape

    # ---- fc1: block-diagonal 1x1 conv (BN folded) -> one MXU matmul ---------
    y1 = (jnp.dot(w1_ref[...], x, preferred_element_type=jnp.float32)
          + b1_ref[...])                   # (R, HW)

    # column index (w mod W) along the flattened lane axis, int32, in-kernel
    col = lax.broadcasted_iota(jnp.int32, (1, HW), 1)
    widx = (col & (W - 1)) if (W & (W - 1)) == 0 else (col % W)

    # ---- MRConv4d max-relative aggregation via XLU rolls + running min ------
    # H-hop by i == flat roll by i*W.  W-hop by i == two flat rolls + select so
    # the lane axis stays dense.  Lane rotation never crosses sublane rows, so
    # each (batch, channel) row wraps around within its own image.
    # x_j = max_i(y1 - roll_i(y1)) (hop 0 included) == y1 - min_i(roll_i(y1)).
    mn = y1                                 # hop 0
    for i in range(K, H, K):                # hops along H
        mn = jnp.minimum(mn, pltpu.roll(y1, shift=i * W, axis=1))
    for i in range(K, W, K):                # hops along W
        ra = pltpu.roll(y1, shift=i, axis=1)               # valid where w >= i
        rb = pltpu.roll(y1, shift=(i - W) % HW, axis=1)    # valid where w <  i
        mn = jnp.minimum(mn, jnp.where(widx >= i, ra, rb))
    x_j = y1 - mn                           # (R, HW), always >= 0

    # ---- graph-conv 1x1 (2C -> 2C per image, block-diagonal, BN folded) -----
    # w2 split in the wrapper -> no sublane concatenate of y1 / x_j needed.
    y2 = (jnp.dot(w2a_ref[...], y1, preferred_element_type=jnp.float32)
          + jnp.dot(w2b_ref[...], x_j, preferred_element_type=jnp.float32)
          + b2_ref[...])                    # (2R, HW)

    # exact (erf) GELU -- matches PyTorch nn.GELU() default numerics
    y2 = 0.5 * y2 * (1.0 + lax.erf(y2 * (1.0 / math.sqrt(2.0))))

    # ---- fc2: 1x1 conv (2C -> C per image, block-diagonal, BN folded) -------
    y3 = (jnp.dot(w3_ref[...], y2, preferred_element_type=jnp.float32)
          + b3_ref[...])                    # (R, HW)

    # ---- residual (drop_path = 0.0 -> identity) -----------------------------
    o_ref[...] = (y3 + x).astype(o_ref.dtype)


# ----------------------------------------------------------------------------
# Wrapper
# ----------------------------------------------------------------------------
def _fold_bn_into_conv(w, b, gamma, beta, mean, var, eps):
    """Exact inference-BN fold: BN(Wx + b) == W'x + b' (both affine)."""
    inv = 1.0 / jnp.sqrt(var.astype(jnp.float32) + eps)
    s = gamma.astype(jnp.float32) * inv
    w_f = w.astype(jnp.float32) * s[:, None]
    b_f = (b.astype(jnp.float32) - mean.astype(jnp.float32)) * s + beta.astype(jnp.float32)
    return w_f, b_f                         # w_f: (Cout, Cin), b_f: (Cout,)


def _pick_nb(B, C, max_rows):
    """Largest NB dividing B with NB*C <= max_rows and a legal sublane block
    (multiple of 8 rows, or the full array)."""
    for nb in range(B, 0, -1):
        if B % nb == 0 and nb * C <= max_rows and ((nb * C) % 8 == 0 or nb == B):
            return nb
    return B


def grapher_pallas(x_nchw, p, K=2, eps=1e-5, max_rows=128):
    """Grapher forward (inference).  x_nchw: (B, C, H, W) float32.

    max_rows: target sublane rows (NB*C) per grid step.  128 is the native MXU
    M/K on v5e; 256 is an option on v6e/v7x (re-derive NB / VMEM per chip --
    v7x has only 64 MiB VMEM).
    """
    B, C, H, W = x_nchw.shape
    HW = H * W

    w1, b1 = _fold_bn_into_conv(p["w1"], p["b1"], p["g1"], p["be1"], p["m1"], p["v1"], eps)
    w2, b2 = _fold_bn_into_conv(p["w2"], p["b2"], p["g2"], p["be2"], p["m2"], p["v2"], eps)
    w3, b3 = _fold_bn_into_conv(p["w3"], p["b3"], p["g3"], p["be3"], p["m3"], p["v3"], eps)

    # ---- batch stacking: NB images per grid step, block-diagonal weights ----
    NB = _pick_nb(B, C, max_rows)
    R = NB * C
    G = B // NB
    eye = jnp.eye(NB, dtype=jnp.float32)
    w1_bd  = jnp.kron(eye, w1)              # (R,  R)
    w2a_bd = jnp.kron(eye, w2[:, :C])       # (2R, R)   acts on y1
    w2b_bd = jnp.kron(eye, w2[:, C:])       # (2R, R)   acts on x_j
    w3_bd  = jnp.kron(eye, w3)              # (R,  2R)
    b1_bd = jnp.tile(b1, (NB,)).reshape(R, 1)
    b2_bd = jnp.tile(b2, (NB,)).reshape(2 * R, 1)
    b3_bd = jnp.tile(b3, (NB,)).reshape(R, 1)
    # NOTE: for real channel counts / large NB on v6e/v7x, cast the *_bd
    # weights and in-kernel activations to bf16 (keep preferred_element_type
    # f32) for ~4x MXU throughput; kept f32 here for reference bit-parity.

    # NCHW stays NCHW: metadata-only reshape to (B*C, H*W); no HBM transposes.
    x2 = x_nchw.reshape(B * C, HW).astype(jnp.float32)

    kernel = partial(_grapher_kernel, H=H, W=W, K=K)
    full = lambda g: (0, 0)

    # Advisory cost hint for XLA scheduling around this small custom call.
    n_hops = (H - K) // K + (W - K) // K
    mm_flops = 2 * B * HW * (C * C + (2 * C) * (2 * C) + C * (2 * C))
    ew_flops = B * HW * (C * (2 * n_hops + 3) + 2 * C * 6)
    param_bytes = 4 * (w1_bd.size + w2a_bd.size + w2b_bd.size + w3_bd.size
                       + b1_bd.size + b2_bd.size + b3_bd.size)
    ce = pl.CostEstimate(flops=int(mm_flops + ew_flops),
                         transcendentals=int(B * 2 * C * HW),
                         bytes_accessed=int(2 * x2.size * 4 + param_bytes))

    out = pl.pallas_call(
        kernel,
        out_shape=jax.ShapeDtypeStruct((B * C, HW), jnp.float32),
        grid_spec=pltpu.PrefetchScalarGridSpec(
            num_scalar_prefetch=0,
            grid=(G,),
            in_specs=[
                pl.BlockSpec((R, HW), lambda g: (g, 0)),      # x (NB images)
                pl.BlockSpec((R, R), full),                   # fc1 w' (block-diag)
                pl.BlockSpec((R, 1), full),                   # fc1 b'
                pl.BlockSpec((2 * R, R), full),               # graph-conv w' (x part)
                pl.BlockSpec((2 * R, R), full),               # graph-conv w' (x_j part)
                pl.BlockSpec((2 * R, 1), full),               # graph-conv b'
                pl.BlockSpec((R, 2 * R), full),               # fc2 w'
                pl.BlockSpec((R, 1), full),                   # fc2 b'
            ],
            out_specs=pl.BlockSpec((R, HW), lambda g: (g, 0)),
        ),
        compiler_params=pltpu.CompilerParams(
            dimension_semantics=("parallel",),           # batch-group axis
            vmem_limit_bytes=32 * 1024 * 1024),          # safe on v5e/v6e/v7x
        cost_estimate=ce,
    )(x2, w1_bd, b1_bd, w2a_bd, w2b_bd, b2_bd, w3_bd, b3_bd)

    return out.reshape(B, C, H, W)


# ----------------------------------------------------------------------------
# Pure-JAX reference mirroring the PyTorch Grapher forward (un-fused BN)
# ----------------------------------------------------------------------------
def grapher_ref(x, p, K=2, eps=1e-5):
    def conv1x1_bn(t, w, b, gamma, beta, mean, var):
        y = jnp.einsum("oc,bchw->bohw", w, t) + b.reshape(1, -1, 1, 1)
        inv = 1.0 / jnp.sqrt(var + eps)
        return ((y - mean.reshape(1, -1, 1, 1)) * inv.reshape(1, -1, 1, 1)
                * gamma.reshape(1, -1, 1, 1) + beta.reshape(1, -1, 1, 1))

    B, C, H, W = x.shape
    shortcut = x
    x1 = conv1x1_bn(x, p["w1"], p["b1"], p["g1"], p["be1"], p["m1"], p["v1"])

    x_j = jnp.zeros_like(x1)
    for i in range(K, H, K):
        x_c = x1 - jnp.concatenate([x1[:, :, -i:, :], x1[:, :, :-i, :]], axis=2)
        x_j = jnp.maximum(x_j, x_c)
    for i in range(K, W, K):
        x_r = x1 - jnp.concatenate([x1[:, :, :, -i:], x1[:, :, :, :-i]], axis=3)
        x_j = jnp.maximum(x_j, x_r)
    feat = jnp.concatenate([x1, x_j], axis=1)

    y2 = conv1x1_bn(feat, p["w2"], p["b2"], p["g2"], p["be2"], p["m2"], p["v2"])
    y2 = 0.5 * y2 * (1.0 + lax.erf(y2 / jnp.sqrt(2.0)))

    y3 = conv1x1_bn(y2, p["w3"], p["b3"], p["g3"], p["be3"], p["m3"], p["v3"])
    return y3 + shortcut


if __name__ == "__main__":
    B, C, H, W, K = 2, 4, 16, 16, 2

    key = jax.random.PRNGKey(0)
    ks = list(jax.random.split(key, 10))

    def bn_stats(k, n):
        kg, kb, km, kv = jax.random.split(k, 4)
        return (1.0 + 0.1 * jax.random.normal(kg, (n,), jnp.float32),           # gamma
                0.1 * jax.random.normal(kb, (n,), jnp.float32),                 # beta
                0.05 * jax.random.normal(km, (n,), jnp.float32),                # running_mean
                1.0 + 0.1 * jnp.abs(jax.random.normal(kv, (n,), jnp.float32)))  # running_var

    x = jax.random.normal(ks[0], (B, C, H, W), dtype=jnp.float32)

    p = {}
    p["w1"] = 0.2 * jax.random.normal(ks[1], (C, C), jnp.float32)
    p["b1"] = 0.1 * jax.random.normal(ks[2], (C,), jnp.float32)
    p["g1"], p["be1"], p["m1"], p["v1"] = bn_stats(ks[3], C)

    p["w2"] = 0.2 * jax.random.normal(ks[4], (2 * C, 2 * C), jnp.float32)
    p["b2"] = 0.1 * jax.random.normal(ks[5], (2 * C,), jnp.float32)
    p["g2"], p["be2"], p["m2"], p["v2"] = bn_stats(ks[6], 2 * C)

    p["w3"] = 0.2 * jax.random.normal(ks[7], (C, 2 * C), jnp.float32)
    p["b3"] = 0.1 * jax.random.normal(ks[8], (C,), jnp.float32)
    p["g3"], p["be3"], p["m3"], p["v3"] = bn_stats(ks[9], C)

    out = grapher_pallas(x, p, K=K)
    out = jax.block_until_ready(out)

    ref = grapher_ref(x, p, K=K)
    assert out.shape == (B, C, H, W), out.shape
    max_err = float(jnp.max(jnp.abs(out - ref)))
    assert jnp.allclose(out, ref, atol=5e-4, rtol=5e-4), max_err

    print("KERNEL_OK")
</pallas_src>

<mosaic_0001>
module attributes {stable_mosaic.version = 11 : i64} {
  func.func @_grapher_kernel(%arg0: i32, %arg1: memref<8x256xf32, #tpu.memory_space<vmem>>, %arg2: memref<8x8xf32, #tpu.memory_space<vmem>>, %arg3: memref<8x1xf32, #tpu.memory_space<vmem>>, %arg4: memref<16x8xf32, #tpu.memory_space<vmem>>, %arg5: memref<16x8xf32, #tpu.memory_space<vmem>>, %arg6: memref<16x1xf32, #tpu.memory_space<vmem>>, %arg7: memref<8x16xf32, #tpu.memory_space<vmem>>, %arg8: memref<8x1xf32, #tpu.memory_space<vmem>>, %arg9: memref<8x256xf32, #tpu.memory_space<vmem>>) attributes {dimension_semantics = [#tpu.dimension_semantics<parallel>], iteration_bounds = array<i64: 1>, scalar_prefetch = 0 : i64, scratch_operands = 0 : i64, tpu.core_type = #tpu.core_type<tc>, window_params = [{transform_indices = @transform_0, window_bounds = array<i64: 8, 256>}, {pipeline_mode = #tpu.pipeline_mode<synchronous>, transform_indices = @transform_1, window_bounds = array<i64: 8, 8>}, {pipeline_mode = #tpu.pipeline_mode<synchronous>, transform_indices = @transform_2, window_bounds = array<i64: 8, 1>}, {pipeline_mode = #tpu.pipeline_mode<synchronous>, transform_indices = @transform_3, window_bounds = array<i64: 16, 8>}, {pipeline_mode = #tpu.pipeline_mode<synchronous>, transform_indices = @transform_4, window_bounds = array<i64: 16, 8>}, {pipeline_mode = #tpu.pipeline_mode<synchronous>, transform_indices = @transform_5, window_bounds = array<i64: 16, 1>}, {pipeline_mode = #tpu.pipeline_mode<synchronous>, transform_indices = @transform_6, window_bounds = array<i64: 8, 16>}, {pipeline_mode = #tpu.pipeline_mode<synchronous>, transform_indices = @transform_7, window_bounds = array<i64: 8, 1>}, {transform_indices = @transform_8, window_bounds = array<i64: 8, 256>}]} {
    %c0 = arith.constant 0 : index
    %c0_0 = arith.constant 0 : index
    %0 = vector.load %arg1[%c0, %c0_0] : memref<8x256xf32, #tpu.memory_space<vmem>>, vector<8x256xf32>
    %c0_1 = arith.constant 0 : index
    %c0_2 = arith.constant 0 : index
    %1 = vector.load %arg2[%c0_1, %c0_2] : memref<8x8xf32, #tpu.memory_space<vmem>>, vector<8x8xf32>
    %cst = arith.constant dense<0.000000e+00> : vector<8x256xf32>
    %2 = tpu.matmul %1, %0, %cst {dimension_numbers = #tpu.dot_dimension_numbers<[1], [0], [0], [1], [0, 0, 1, 1], [], []>} : vector<8x8xf32>, vector<8x256xf32>, vector<8x256xf32> -> vector<8x256xf32>
    %c0_3 = arith.constant 0 : index
    %c0_4 = arith.constant 0 : index
    %3 = vector.load %arg3[%c0_3, %c0_4] : memref<8x1xf32, #tpu.memory_space<vmem>>, vector<8x1xf32>
    %4 = vector.broadcast %3 : vector<8x1xf32> to vector<8x256xf32>
    %5 = arith.addf %2, %4 : vector<8x256xf32>
    %6 = tpu.iota {dimensions = array<i32: 1>} : vector<1x256xi32>
    %c15_i32 = arith.constant 15 : i32
    %7 = vector.broadcast %c15_i32 : i32 to vector<1x256xi32>
    %8 = arith.andi %6, %7 : vector<1x256xi32>
    %c32_i32 = arith.constant 32 : i32
    %9 = tpu.dynamic_rotate %5 by %c32_i32 dim 1 : vector<8x256xf32>, i32 -> vector<8x256xf32>
    %10 = arith.minimumf %5, %9 : vector<8x256xf32>
    %c64_i32 = arith.constant 64 : i32
    %11 = tpu.dynamic_rotate %5 by %c64_i32 dim 1 : vector<8x256xf32>, i32 -> vector<8x256xf32>
    %12 = arith.minimumf %10, %11 : vector<8x256xf32>
    %c96_i32 = arith.constant 96 : i32
    %13 = tpu.dynamic_rotate %5 by %c96_i32 dim 1 : vector<8x256xf32>, i32 -> vector<8x256xf32>
    %14 = arith.minimumf %12, %13 : vector<8x256xf32>
    %c128_i32 = arith.constant 128 : i32
    %15 = tpu.dynamic_rotate %5 by %c128_i32 dim 1 : vector<8x256xf32>, i32 -> vector<8x256xf32>
    %16 = arith.minimumf %14, %15 : vector<8x256xf32>
    %c160_i32 = arith.constant 160 : i32
    %17 = tpu.dynamic_rotate %5 by %c160_i32 dim 1 : vector<8x256xf32>, i32 -> vector<8x256xf32>
    %18 = arith.minimumf %16, %17 : vector<8x256xf32>
    %c192_i32 = arith.constant 192 : i32
    %19 = tpu.dynamic_rotate %5 by %c192_i32 dim 1 : vector<8x256xf32>, i32 -> vector<8x256xf32>
    %20 = arith.minimumf %18, %19 : vector<8x256xf32>
    %c224_i32 = arith.constant 224 : i32
    %21 = tpu.dynamic_rotate %5 by %c224_i32 dim 1 : vector<8x256xf32>, i32 -> vector<8x256xf32>
    %22 = arith.minimumf %20, %21 : vector<8x256xf32>
    %c2_i32 = arith.constant 2 : i32
    %23 = tpu.dynamic_rotate %5 by %c2_i32 dim 1 : vector<8x256xf32>, i32 -> vector<8x256xf32>
    %c242_i32 = arith.constant 242 : i32
    %24 = tpu.dynamic_rotate %5 by %c242_i32 dim 1 : vector<8x256xf32>, i32 -> vector<8x256xf32>
    %c2_i32_5 = arith.constant 2 : i32
    %25 = vector.broadcast %c2_i32_5 : i32 to vector<1x256xi32>
    %26 = arith.cmpi sge, %8, %25 : vector<1x256xi32>
    %27 = vector.shape_cast %26 : vector<1x256xi1> to vector<1x256xi1>
    %28 = vector.broadcast %27 : vector<1x256xi1> to vector<8x256xi1>
    %29 = arith.select %28, %23, %24 : vector<8x256xi1>, vector<8x256xf32>
    %30 = arith.minimumf %22, %29 : vector<8x256xf32>
    %c4_i32 = arith.constant 4 : i32
    %31 = tpu.dynamic_rotate %5 by %c4_i32 dim 1 : vector<8x256xf32>, i32 -> vector<8x256xf32>
    %c244_i32 = arith.constant 244 : i32
    %32 = tpu.dynamic_rotate %5 by %c244_i32 dim 1 : vector<8x256xf32>, i32 -> vector<8x256xf32>
    %c4_i32_6 = arith.constant 4 : i32
    %33 = vector.broadcast %c4_i32_6 : i32 to vector<1x256xi32>
    %34 = arith.cmpi sge, %8, %33 : vector<1x256xi32>
    %35 = vector.shape_cast %34 : vector<1x256xi1> to vector<1x256xi1>
    %36 = vector.broadcast %35 : vector<1x256xi1> to vector<8x256xi1>
    %37 = arith.select %36, %31, %32 : vector<8x256xi1>, vector<8x256xf32>
    %38 = arith.minimumf %30, %37 : vector<8x256xf32>
    %c6_i32 = arith.constant 6 : i32
    %39 = tpu.dynamic_rotate %5 by %c6_i32 dim 1 : vector<8x256xf32>, i32 -> vector<8x256xf32>
    %c246_i32 = arith.constant 246 : i32
    %40 = tpu.dynamic_rotate %5 by %c246_i32 dim 1 : vector<8x256xf32>, i32 -> vector<8x256xf32>
    %c6_i32_7 = arith.constant 6 : i32
    %41 = vector.broadcast %c6_i32_7 : i32 to vector<1x256xi32>
    %42 = arith.cmpi sge, %8, %41 : vector<1x256xi32>
    %43 = vector.shape_cast %42 : vector<1x256xi1> to vector<1x256xi1>
    %44 = vector.broadcast %43 : vector<1x256xi1> to vector<8x256xi1>
    %45 = arith.select %44, %39, %40 : vector<8x256xi1>, vector<8x256xf32>
    %46 = arith.minimumf %38, %45 : vector<8x256xf32>
    %c8_i32 = arith.constant 8 : i32
    %47 = tpu.dynamic_rotate %5 by %c8_i32 dim 1 : vector<8x256xf32>, i32 -> vector<8x256xf32>
    %c248_i32 = arith.constant 248 : i32
    %48 = tpu.dynamic_rotate %5 by %c248_i32 dim 1 : vector<8x256xf32>, i32 -> vector<8x256xf32>
    %c8_i32_8 = arith.constant 8 : i32
    %49 = vector.broadcast %c8_i32_8 : i32 to vector<1x256xi32>
    %50 = arith.cmpi sge, %8, %49 : vector<1x256xi32>
    %51 = vector.shape_cast %50 : vector<1x256xi1> to vector<1x256xi1>
    %52 = vector.broadcast %51 : vector<1x256xi1> to vector<8x256xi1>
    %53 = arith.select %52, %47, %48 : vector<8x256xi1>, vector<8x256xf32>
    %54 = arith.minimumf %46, %53 : vector<8x256xf32>
    %c10_i32 = arith.constant 10 : i32
    %55 = tpu.dynamic_rotate %5 by %c10_i32 dim 1 : vector<8x256xf32>, i32 -> vector<8x256xf32>
    %c250_i32 = arith.constant 250 : i32
    %56 = tpu.dynamic_rotate %5 by %c250_i32 dim 1 : vector<8x256xf32>, i32 -> vector<8x256xf32>
    %c10_i32_9 = arith.constant 10 : i32
    %57 = vector.broadcast %c10_i32_9 : i32 to vector<1x256xi32>
    %58 = arith.cmpi sge, %8, %57 : vector<1x256xi32>
    %59 = vector.shape_cast %58 : vector<1x256xi1> to vector<1x256xi1>
    %60 = vector.broadcast %59 : vector<1x256xi1> to vector<8x256xi1>
    %61 = arith.select %60, %55, %56 : vector<8x256xi1>, vector<8x256xf32>
    %62 = arith.minimumf %54, %61 : vector<8x256xf32>
    %c12_i32 = arith.constant 12 : i32
    %63 = tpu.dynamic_rotate %5 by %c12_i32 dim 1 : vector<8x256xf32>, i32 -> vector<8x256xf32>
    %c252_i32 = arith.constant 252 : i32
    %64 = tpu.dynamic_rotate %5 by %c252_i32 dim 1 : vector<8x256xf32>, i32 -> vector<8x256xf32>
    %c12_i32_10 = arith.constant 12 : i32
    %65 = vector.broadcast %c12_i32_10 : i32 to vector<1x256xi32>
    %66 = arith.cmpi sge, %8, %65 : vector<1x256xi32>
    %67 = vector.shape_cast %66 : vector<1x256xi1> to vector<1x256xi1>
    %68 = vector.broadcast %67 : vector<1x256xi1> to vector<8x256xi1>
    %69 = arith.select %68, %63, %64 : vector<8x256xi1>, vector<8x256xf32>
    %70 = arith.minimumf %62, %69 : vector<8x256xf32>
    %c14_i32 = arith.constant 14 : i32
    %71 = tpu.dynamic_rotate %5 by %c14_i32 dim 1 : vector<8x256xf32>, i32 -> vector<8x256xf32>
    %c254_i32 = arith.constant 254 : i32
    %72 = tpu.dynamic_rotate %5 by %c254_i32 dim 1 : vector<8x256xf32>, i32 -> vector<8x256xf32>
    %c14_i32_11 = arith.constant 14 : i32
    %73 = vector.broadcast %c14_i32_11 : i32 to vector<1x256xi32>
    %74 = arith.cmpi sge, %8, %73 : vector<1x256xi32>
    %75 = vector.shape_cast %74 : vector<1x256xi1> to vector<1x256xi1>
    %76 = vector.broadcast %75 : vector<1x256xi1> to vector<8x256xi1>
    %77 = arith.select %76, %71, %72 : vector<8x256xi1>, vector<8x256xf32>
    %78 = arith.minimumf %70, %77 : vector<8x256xf32>
    %79 = arith.subf %5, %78 : vector<8x256xf32>
    %c0_12 = arith.constant 0 : index
    %c0_13 = arith.constant 0 : index
    %80 = vector.load %arg4[%c0_12, %c0_13] : memref<16x8xf32, #tpu.memory_space<vmem>>, vector<16x8xf32>
    %cst_14 = arith.constant dense<0.000000e+00> : vector<16x256xf32>
    %81 = tpu.matmul %80, %5, %cst_14 {dimension_numbers = #tpu.dot_dimension_numbers<[1], [0], [0], [1], [0, 0, 1, 1], [], []>} : vector<16x8xf32>, vector<8x256xf32>, vector<16x256xf32> -> vector<16x256xf32>
    %c0_15 = arith.constant 0 : index
    %c0_16 = arith.constant 0 : index
    %82 = vector.load %arg5[%c0_15, %c0_16] : memref<16x8xf32, #tpu.memory_space<vmem>>, vector<16x8xf32>
    %cst_17 = arith.constant dense<0.000000e+00> : vector<16x256xf32>
    %83 = tpu.matmul %82, %79, %cst_17 {dimension_numbers = #tpu.dot_dimension_numbers<[1], [0], [0], [1], [0, 0, 1, 1], [], []>} : vector<16x8xf32>, vector<8x256xf32>, vector<16x256xf32> -> vector<16x256xf32>
    %84 = arith.addf %81, %83 : vector<16x256xf32>
    %c0_18 = arith.constant 0 : index
    %c0_19 = arith.constant 0 : index
    %85 = vector.load %arg6[%c0_18, %c0_19] : memref<16x1xf32, #tpu.memory_space<vmem>>, vector<16x1xf32>
    %86 = vector.broadcast %85 : vector<16x1xf32> to vector<16x256xf32>
    %87 = arith.addf %84, %86 : vector<16x256xf32>
    %cst_20 = arith.constant 5.000000e-01 : f32
    %88 = vector.broadcast %cst_20 : f32 to vector<16x256xf32>
    %89 = arith.mulf %88, %87 : vector<16x256xf32>
    %cst_21 = arith.constant 0.707106769 : f32
    %90 = vector.broadcast %cst_21 : f32 to vector<16x256xf32>
    %91 = arith.mulf %87, %90 : vector<16x256xf32>
    %92 = math.erf %91 : vector<16x256xf32>
    %cst_22 = arith.constant 1.000000e+00 : f32
    %93 = vector.broadcast %cst_22 : f32 to vector<16x256xf32>
    %94 = arith.addf %93, %92 : vector<16x256xf32>
    %95 = arith.mulf %89, %94 : vector<16x256xf32>
    %c0_23 = arith.constant 0 : index
    %c0_24 = arith.constant 0 : index
    %96 = vector.load %arg7[%c0_23, %c0_24] : memref<8x16xf32, #tpu.memory_space<vmem>>, vector<8x16xf32>
    %cst_25 = arith.constant dense<0.000000e+00> : vector<8x256xf32>
    %97 = tpu.matmul %96, %95, %cst_25 {dimension_numbers = #tpu.dot_dimension_numbers<[1], [0], [0], [1], [0, 0, 1, 1], [], []>} : vector<8x16xf32>, vector<16x256xf32>, vector<8x256xf32> -> vector<8x256xf32>
    %c0_26 = arith.constant 0 : index
    %c0_27 = arith.constant 0 : index
    %98 = vector.load %arg8[%c0_26, %c0_27] : memref<8x1xf32, #tpu.memory_space<vmem>>, vector<8x1xf32>
    %99 = vector.broadcast %98 : vector<8x1xf32> to vector<8x256xf32>
    %100 = arith.addf %97, %99 : vector<8x256xf32>
    %101 = arith.addf %100, %0 : vector<8x256xf32>
    %c0_28 = arith.constant 0 : index
    %c0_29 = arith.constant 0 : index
    %102 = vector.load %arg9[%c0_28, %c0_29] : memref<8x256xf32, #tpu.memory_space<vmem>>, vector<8x256xf32>
    tpu.vector_store %arg9[%c0_28, %c0_29], %101 {strides = array<i32>} : memref<8x256xf32, #tpu.memory_space<vmem>>, vector<8x256xf32>,
    return
  }
  func.func @transform_0(%arg0: i32) -> (i32, i32) {
    %c0_i32 = arith.constant 0 : i32
    %c0_i32_0 = arith.constant 0 : i32
    return %arg0, %c0_i32 : i32, i32
  }
  func.func @transform_1(%arg0: i32) -> (i32, i32) {
    %c0_i32 = arith.constant 0 : i32
    %c0_i32_0 = arith.constant 0 : i32
    %c0_i32_1 = arith.constant 0 : i32
    return %c0_i32, %c0_i32_0 : i32, i32
  }
  func.func @transform_2(%arg0: i32) -> (i32, i32) {
    %c0_i32 = arith.constant 0 : i32
    %c0_i32_0 = arith.constant 0 : i32
    %c0_i32_1 = arith.constant 0 : i32
    return %c0_i32, %c0_i32_0 : i32, i32
  }
  func.func @transform_3(%arg0: i32) -> (i32, i32) {
    %c0_i32 = arith.constant 0 : i32
    %c0_i32_0 = arith.constant 0 : i32
    %c0_i32_1 = arith.constant 0 : i32
    return %c0_i32, %c0_i32_0 : i32, i32
  }
  func.func @transform_4(%arg0: i32) -> (i32, i32) {
    %c0_i32 = arith.constant 0 : i32
    %c0_i32_0 = arith.constant 0 : i32
    %c0_i32_1 = arith.constant 0 : i32
    return %c0_i32, %c0_i32_0 : i32, i32
  }
  func.func @transform_5(%arg0: i32) -> (i32, i32) {
    %c0_i32 = arith.constant 0 : i32
    %c0_i32_0 = arith.constant 0 : i32
    %c0_i32_1 = arith.constant 0 : i32
    return %c0_i32, %c0_i32_0 : i32, i32
  }
  func.func @transform_6(%arg0: i32) -> (i32, i32) {
    %c0_i32 = arith.constant 0 : i32
    %c0_i32_0 = arith.constant 0 : i32
    %c0_i32_1 = arith.constant 0 : i32
    return %c0_i32, %c0_i32_0 : i32, i32
  }
  func.func @transform_7(%arg0: i32) -> (i32, i32) {
    %c0_i32 = arith.constant 0 : i32
    %c0_i32_0 = arith.constant 0 : i32
    %c0_i32_1 = arith.constant 0 : i32
    return %c0_i32, %c0_i32_0 : i32, i32
  }
  func.func @transform_8(%arg0: i32) -> (i32, i32) {
    %c0_i32 = arith.constant 0 : i32
    %c0_i32_0 = arith.constant 0 : i32
    return %arg0, %c0_i32 : i32, i32
  }
}

</mosaic_0001>

<llo_original>
// kernel: tpu_custom_call.1
$region0: #{tpu_custom_call.1}
  #allocation0 [shape = 'u32[]', space=smem, size = 0x4, offset = 0x4, fixed_abs, tag = 'smem constant byte address 0x4 - core index']
  #allocation1 [shape = 'u32[72,128]{1,0:T(1,128)}', space=vmem, size = 0x9000, scoped, tag = 'internal scratch']
  %s0 = inlined_call_operand.vmem [shape: f32[8,256], index: 0, kind: input, shape index: {}]
  %s1 = inlined_call_operand.vmem [shape: f32[8,8], index: 1, kind: input, shape index: {}]
  %s2 = inlined_call_operand.vmem [shape: f32[8,1], index: 2, kind: input, shape index: {}]
  %s3 = inlined_call_operand.vmem [shape: f32[16,8], index: 3, kind: input, shape index: {}]
  %s4 = inlined_call_operand.vmem [shape: f32[16,8], index: 4, kind: input, shape index: {}]
  %s5 = inlined_call_operand.vmem [shape: f32[16,1], index: 5, kind: input, shape index: {}]
  %s6 = inlined_call_operand.vmem [shape: f32[8,16], index: 6, kind: input, shape index: {}]
  %s7 = inlined_call_operand.vmem [shape: f32[8,1], index: 7, kind: input, shape index: {}]
  %s8 = inlined_call_operand.hbm [shape: f32[8,256], index: 8, kind: output, shape index: {}]
  %s9 = sld [smem:[#allocation0]]
  $region42: #{tpu_custom_call.1} parent=0
    _
  %s11 = ssub.s32 1, %s9
  %s12 = scalar_select 0, %s11, %s9
  $region1: #{tpu_custom_call.1} parent=0
    #allocation2 [shape = 'u8[8192]{0}', space=vmem, size = 0x2000, scoped, tag = 'output window, operand 0, single buffered']
    #allocation3 [shape = 's32[1]{0}', space=sflag, size = 0x4, scoped, tag = 'scoped memory for tpu_custom_call.1']
    %13 = vsyncpa [#allocation3], 0
    // Predicated region
    $region2: #{tpu_custom_call.1} parent=1 // pred_check
      _
    $region3: #{tpu_custom_call.1} parent=1 // pred_check_branch
      %15 = sbr.rel (0) target = $region5
    $region4: #{tpu_custom_call.1} parent=1 // pred_region
      _
    $region5: #{tpu_custom_call.1} parent=1 // pred_fallthru
      _
    // Predicated region
    $region6: #{tpu_custom_call.1} parent=1 // pred_check
      _
    $region7: #{tpu_custom_call.1} parent=1 // pred_check_branch
      %17 = sbr.rel (0) target = $region9
    $region8: #{tpu_custom_call.1} parent=1 // pred_region
      _
    $region9: #{tpu_custom_call.1} parent=1 // pred_fallthru
      _
    // Predicated region
    $region10: #{tpu_custom_call.1} parent=1 // pred_check
      _
    $region11: #{tpu_custom_call.1} parent=1 // pred_check_branch
      %19 = sbr.rel (0) target = $region13
    $region12: #{tpu_custom_call.1} parent=1 // pred_region
      _
    $region13: #{tpu_custom_call.1} parent=1 // pred_fallthru
      _
    // Predicated region
    $region14: #{tpu_custom_call.1} parent=1 // pred_check
      _
    $region15: #{tpu_custom_call.1} parent=1 // pred_check_branch
      %21 = sbr.rel (0) target = $region17
    $region16: #{tpu_custom_call.1} parent=1 // pred_region
      _
    $region17: #{tpu_custom_call.1} parent=1 // pred_fallthru
      _
    // Predicated region
    $region18: #{tpu_custom_call.1} parent=1 // pred_check
      _
    $region19: #{tpu_custom_call.1} parent=1 // pred_check_branch
      %23 = sbr.rel (0) target = $region21
    $region20: #{tpu_custom_call.1} parent=1 // pred_region
      _
    $region21: #{tpu_custom_call.1} parent=1 // pred_fallthru
      _
    // Predicated region
    $region22: #{tpu_custom_call.1} parent=1 // pred_check
      _
    $region23: #{tpu_custom_call.1} parent=1 // pred_check_branch
      %25 = sbr.rel (0) target = $region25
    $region24: #{tpu_custom_call.1} parent=1 // pred_region
      _
    $region25: #{tpu_custom_call.1} parent=1 // pred_fallthru
      _
    // Predicated region
    $region26: #{tpu_custom_call.1} parent=1 // pred_check
      _
    $region27: #{tpu_custom_call.1} parent=1 // pred_check_branch
      %27 = sbr.rel (0) target = $region29
    $region28: #{tpu_custom_call.1} parent=1 // pred_region
      _
    $region29: #{tpu_custom_call.1} parent=1 // pred_fallthru
      _
    // Predicated region
    $region30: #{tpu_custom_call.1} parent=1 // pred_check
      _
    $region31: #{tpu_custom_call.1} parent=1 // pred_check_branch
      %29 = sbr.rel (0) target = $region33
    $region32: #{tpu_custom_call.1} parent=1 // pred_region
      _
    $region33: #{tpu_custom_call.1} parent=1 // pred_fallthru
      _
    %v30 = vld [vmem:[%s0] sm:$0xff]
    %v31 = vld [vmem:[%s0 + $0x8] sm:$0xff]
    %v32 = vld [vmem:[%s1] sm:$0xff]
    %v33 = vld [vmem:[%s2] sm:$0xff]
    %35 = vset.pattern.permute.xlu0 0
    %36 = vperm.xlu0 %35, %v33
    %v37 = vpop.permute.xlu0 %36
    %vm39 = vcmask 64512
    %v41 = vsel %vm39, %v32, 0
    %43 = vmatpush.msra.mxu0 0.0
    %44 = vmatpush.msra.mxu0 0.0
    %45 = vmatpush.msra.mxu0 0.0
    %46 = vmatpush.msra.mxu0 0.0
    %47 = vmatpush.msra.mxu0 0.0
    %48 = vmatpush.msra.mxu0 0.0
    %49 = vmatpush.msra.mxu0 0.0
    %50 = vmatpush.msra.mxu0 0.0
    %51 = vmatpush.msra.mxu0 0.0
    %52 = vmatpush.msra.mxu0 0.0
    %53 = vmatpush.msra.mxu0 0.0
    %54 = vmatpush.msra.mxu0 0.0
    %55 = vmatpush.msra.mxu0 0.0
    %56 = vmatpush.msra.mxu0 0.0
    %57 = vmatpush.msra.mxu0 0.0
    %58 = vmatpush.msra.mxu0 %v30
    %59 = vmatmul.f32.gmra.mxu0 %v41
    %v60 = vpop.f32.mrf.mxu0
    %v61 = vadd.f32 %v37, %v60
    %62 = vdwg.mxu0
    %63 = vmatpush.msra.mxu0 0.0
    %64 = vmatpush.msra.mxu0 0.0
    %65 = vmatpush.msra.mxu0 0.0
    %66 = vmatpush.msra.mxu0 0.0
    %67 = vmatpush.msra.mxu0 0.0
    %68 = vmatpush.msra.mxu0 0.0
    %69 = vmatpush.msra.mxu0 0.0
    %70 = vmatpush.msra.mxu0 0.0
    %71 = vmatpush.msra.mxu0 0.0
    %72 = vmatpush.msra.mxu0 0.0
    %73 = vmatpush.msra.mxu0 0.0
    %74 = vmatpush.msra.mxu0 0.0
    %75 = vmatpush.msra.mxu0 0.0
    %76 = vmatpush.msra.mxu0 0.0
    %77 = vmatpush.msra.mxu0 0.0
    %78 = vmatpush.msra.mxu0 %v31
    %79 = vmatmul.f32.gmra.mxu0 %v41
    %v80 = vpop.f32.mrf.mxu0
    %v81 = vadd.f32 %v37, %v80
    %82 = vdwg.mxu0
    %v83 = vlaneseq
    %v84 = vand.u32 %v83, 127
    %v85 = vadd.s32 %v84, 128
    %v86 = vand.u32 %v84, 15
    %v87 = vand.u32 %v85, 15
    %88 = vrot.lane.b32.xlu0 %v61, 32
    %v89 = vpop.permute.xlu0 %88
    %90 = vrot.lane.b32.xlu0 %v81, 32
    %v91 = vpop.permute.xlu0 %90
    %vm92 = vcmp.lt.s32.totalorder %v84, 32
    %v93 = vsel %vm92, %v89, %v91
    %v94 = vsel %vm92, %v91, %v89
    %v95 = vmin.f32 %v61, %v94
    %v96 = vmin.f32 %v81, %v93
    %97 = vrot.lane.b32.xlu0 %v61, 64
    %v98 = vpop.permute.xlu0 %97
    %99 = vrot.lane.b32.xlu0 %v81, 64
    %v100 = vpop.permute.xlu0 %99
    %vm101 = vcmp.lt.s32.totalorder %v84, 64
    %v102 = vsel %vm101, %v98, %v100
    %v103 = vsel %vm101, %v100, %v98
    %v104 = vmin.f32 %v95, %v103
    %v105 = vmin.f32 %v96, %v102
    %106 = vrot.lane.b32.xlu0 %v61, 96
    %v107 = vpop.permute.xlu0 %106
    %108 = vrot.lane.b32.xlu0 %v81, 96
    %v109 = vpop.permute.xlu0 %108
    %vm110 = vcmp.lt.s32.totalorder %v84, 96
    %v111 = vsel %vm110, %v107, %v109
    %v112 = vsel %vm110, %v109, %v107
    %v113 = vmin.f32 %v104, %v112
    %v114 = vmin.f32 %v105, %v111
    %v115 = vmin.f32 %v113, %v81
    %v116 = vmin.f32 %v114, %v61
    %v117 = vmin.f32 %v115, %v93
    %v118 = vmin.f32 %v116, %v94
    %v119 = vmin.f32 %v117, %v102
    %v120 = vmin.f32 %v118, %v103
    %v121 = vmin.f32 %v119, %v111
    %v122 = vmin.f32 %v120, %v112
    %123 = vrot.lane.b32.xlu0 %v61, 2
    %v124 = vpop.permute.xlu0 %123
    %125 = vrot.lane.b32.xlu0 %v81, 2
    %v126 = vpop.permute.xlu0 %125
    %vm127 = vcmp.lt.s32.totalorder %v84, 2
    %v128 = vsel %vm127, %v124, %v126
    %v129 = vsel %vm127, %v126, %v124
    %130 = vrot.lane.b32.xlu0 %v61, 114
    %v131 = vpop.permute.xlu0 %130
    %132 = vrot.lane.b32.xlu0 %v81, 114
    %v133 = vpop.permute.xlu0 %132
    %vm134 = vcmp.lt.s32.totalorder %v84, 114
    %v135 = vsel %vm134, %v131, %v133
    %v136 = vsel %vm134, %v133, %v131
    %vm137 = vcmp.ge.s32.totalorder %v86, 2
    %vm138 = vcmp.ge.s32.totalorder %v87, 2
    %v139 = vsel %vm137, 1, 0
    %v140 = vsel %vm138, 1, 0
    %vm141 = vcmp.eq.s32.totalorder %v139, 1
    %vm142 = vcmp.eq.s32.totalorder %v140, 1
    %v143 = vsel %vm141, %v129, %v135
    %v144 = vsel %vm142, %v128, %v136
    %v145 = vmin.f32 %v121, %v143
    %v146 = vmin.f32 %v122, %v144
    %147 = vrot.lane.b32.xlu0 %v61, 4
    %v148 = vpop.permute.xlu0 %147
    %149 = vrot.lane.b32.xlu0 %v81, 4
    %v150 = vpop.permute.xlu0 %149
    %vm151 = vcmp.lt.s32.totalorder %v84, 4
    %v152 = vsel %vm151, %v148, %v150
    %v153 = vsel %vm151, %v150, %v148
    %154 = vrot.lane.b32.xlu0 %v61, 116
    %v155 = vpop.permute.xlu0 %154
    %156 = vrot.lane.b32.xlu0 %v81, 116
    %v157 = vpop.permute.xlu0 %156
    %vm158 = vcmp.lt.s32.totalorder %v84, 116
    %v159 = vsel %vm158, %v155, %v157
    %v160 = vsel %vm158, %v157, %v155
    %vm161 = vcmp.ge.s32.totalorder %v86, 4
    %vm162 = vcmp.ge.s32.totalorder %v87, 4
    %v163 = vsel %vm161, 1, 0
    %v164 = vsel %vm162, 1, 0
    %vm165 = vcmp.eq.s32.totalorder %v163, 1
    %vm166 = vcmp.eq.s32.totalorder %v164, 1
    %v167 = vsel %vm165, %v153, %v159
    %v168 = vsel %vm166, %v152, %v160
    %v169 = vmin.f32 %v145, %v167
    %v170 = vmin.f32 %v146, %v168
    %171 = vrot.lane.b32.xlu0 %v61, 6
    %v172 = vpop.permute.xlu0 %171
    %173 = vrot.lane.b32.xlu0 %v81, 6
    %v174 = vpop.permute.xlu0 %173
    %vm175 = vcmp.lt.s32.totalorder %v84, 6
    %v176 = vsel %vm175, %v172, %v174
    %v177 = vsel %vm175, %v174, %v172
    %178 = vrot.lane.b32.xlu0 %v61, 118
    %v179 = vpop.permute.xlu0 %178
    %180 = vrot.lane.b32.xlu0 %v81, 118
    %v181 = vpop.permute.xlu0 %180
    %vm182 = vcmp.lt.s32.totalorder %v84, 118
    %v183 = vsel %vm182, %v179, %v181
    %v184 = vsel %vm182, %v181, %v179
    %vm185 = vcmp.ge.s32.totalorder %v86, 6
    %vm186 = vcmp.ge.s32.totalorder %v87, 6
    %v187 = vsel %vm185, 1, 0
    %v188 = vsel %vm186, 1, 0
    %vm189 = vcmp.eq.s32.totalorder %v187, 1
    %vm190 = vcmp.eq.s32.totalorder %v188, 1
    %v191 = vsel %vm189, %v177, %v183
    %v192 = vsel %vm190, %v176, %v184
    %v193 = vmin.f32 %v169, %v191
    %v194 = vmin.f32 %v170, %v192
    %195 = vrot.lane.b32.xlu0 %v61, 8
    %v196 = vpop.permute.xlu0 %195
    %197 = vrot.lane.b32.xlu0 %v81, 8
    %v198 = vpop.permute.xlu0 %197
    %vm199 = vcmp.lt.s32.totalorder %v84, 8
    %v200 = vsel %vm199, %v196, %v198
    %v201 = vsel %vm199, %v198, %v196
    %202 = vrot.lane.b32.xlu0 %v61, 120
    %v203 = vpop.permute.xlu0 %202
    %204 = vrot.lane.b32.xlu0 %v81, 120
    %v205 = vpop.permute.xlu0 %204
    %vm206 = vcmp.lt.s32.totalorder %v84, 120
    %v207 = vsel %vm206, %v203, %v205
    %v208 = vsel %vm206, %v205, %v203
    %vm209 = vcmp.ge.s32.totalorder %v86, 8
    %vm210 = vcmp.ge.s32.totalorder %v87, 8
    %v211 = vsel %vm209, 1, 0
    %v212 = vsel %vm210, 1, 0
    %vm213 = vcmp.eq.s32.totalorder %v211, 1
    %vm214 = vcmp.eq.s32.totalorder %v212, 1
    %v215 = vsel %vm213, %v201, %v207
    %v216 = vsel %vm214, %v200, %v208
    %v217 = vmin.f32 %v193, %v215
    %v218 = vmin.f32 %v194, %v216
    %219 = vrot.lane.b32.xlu0 %v61, 10
    %v220 = vpop.permute.xlu0 %219
    %221 = vrot.lane.b32.xlu0 %v81, 10
    %v222 = vpop.permute.xlu0 %221
    %vm223 = vcmp.lt.s32.totalorder %v84, 10
    %v224 = vsel %vm223, %v220, %v222
    %v225 = vsel %vm223, %v222, %v220
    %226 = vrot.lane.b32.xlu0 %v61, 122
    %v227 = vpop.permute.xlu0 %226
    %228 = vrot.lane.b32.xlu0 %v81, 122
    %v229 = vpop.permute.xlu0 %228
    %vm230 = vcmp.lt.s32.totalorder %v84, 122
    %v231 = vsel %vm230, %v227, %v229
    %v232 = vsel %vm230, %v229, %v227
    %vm233 = vcmp.ge.s32.totalorder %v86, 10
    %vm234 = vcmp.ge.s32.totalorder %v87, 10
    %v235 = vsel %vm233, 1, 0
    %v236 = vsel %vm234, 1, 0
    %vm237 = vcmp.eq.s32.totalorder %v235, 1
    %vm238 = vcmp.eq.s32.totalorder %v236, 1
    %v239 = vsel %vm237, %v225, %v231
    %v240 = vsel %vm238, %v224, %v232
    %v241 = vmin.f32 %v217, %v239
    %v242 = vmin.f32 %v218, %v240
    %243 = vrot.lane.b32.xlu0 %v61, 12
    %v244 = vpop.permute.xlu0 %243
    %245 = vrot.lane.b32.xlu0 %v81, 12
    %v246 = vpop.permute.xlu0 %245
    %vm247 = vcmp.lt.s32.totalorder %v84, 12
    %v248 = vsel %vm247, %v244, %v246
    %v249 = vsel %vm247, %v246, %v244
    %250 = vrot.lane.b32.xlu0 %v61, 124
    %v251 = vpop.permute.xlu0 %250
    %252 = vrot.lane.b32.xlu0 %v81, 124
    %v253 = vpop.permute.xlu0 %252
    %vm254 = vcmp.lt.s32.totalorder %v84, 124
    %v255 = vsel %vm254, %v251, %v253
    %v256 = vsel %vm254, %v253, %v251
    %vm257 = vcmp.ge.s32.totalorder %v86, 12
    %vm258 = vcmp.ge.s32.totalorder %v87, 12
    %v259 = vsel %vm257, 1, 0
    %v260 = vsel %vm258, 1, 0
    %vm261 = vcmp.eq.s32.totalorder %v259, 1
    %vm262 = vcmp.eq.s32.totalorder %v260, 1
    %v263 = vsel %vm261, %v249, %v255
    %v264 = vsel %vm262, %v248, %v256
    %v265 = vmin.f32 %v241, %v263
    %v266 = vmin.f32 %v242, %v264
    %267 = vrot.lane.b32.xlu0 %v61, 14
    %v268 = vpop.permute.xlu0 %267
    %269 = vrot.lane.b32.xlu0 %v81, 14
    %v270 = vpop.permute.xlu0 %269
    %vm271 = vcmp.lt.s32.totalorder %v84, 14
    %v272 = vsel %vm271, %v268, %v270
    %v273 = vsel %vm271, %v270, %v268
    %274 = vrot.lane.b32.xlu0 %v61, 126
    %v275 = vpop.permute.xlu0 %274
    %276 = vrot.lane.b32.xlu0 %v81, 126
    %v277 = vpop.permute.xlu0 %276
    %vm278 = vcmp.lt.s32.totalorder %v84, 126
    %v279 = vsel %vm278, %v275, %v277
    %v280 = vsel %vm278, %v277, %v275
    %vm281 = vcmp.ge.s32.totalorder %v86, 14
    %vm282 = vcmp.ge.s32.totalorder %v87, 14
    %v283 = vsel %vm281, 1, 0
    %v284 = vsel %vm282, 1, 0
    %vm285 = vcmp.eq.s32.totalorder %v283, 1
    %vm286 = vcmp.eq.s32.totalorder %v284, 1
    %v287 = vsel %vm285, %v273, %v279
    %v288 = vsel %vm286, %v272, %v280
    %v289 = vmin.f32 %v265, %v287
    %v290 = vmin.f32 %v266, %v288
    %v291 = vsub.f32 %v61, %v289
    %v292 = vsub.f32 %v81, %v290
    %v293 = vld [vmem:[%s3] sm:$0xff]
    %v294 = vld [vmem:[%s3 + $0x8] sm:$0xff]
    %v295 = vld [vmem:[%s4] sm:$0xff]
    %v296 = vld [vmem:[%s4 + $0x8] sm:$0xff]
    %v298 = vsel %vm39, %v295, 0
    %v301 = vsel %vm39, %v296, 0
    %303 = vmatpush.msra.mxu0 0.0
    %304 = vmatpush.msra.mxu0 0.0
    %305 = vmatpush.msra.mxu0 0.0
    %306 = vmatpush.msra.mxu0 0.0
    %307 = vmatpush.msra.mxu0 0.0
    %308 = vmatpush.msra.mxu0 0.0
    %309 = vmatpush.msra.mxu0 0.0
    %310 = vmatpush.msra.mxu0 0.0
    %311 = vmatpush.msra.mxu0 0.0
    %312 = vmatpush.msra.mxu0 0.0
    %313 = vmatpush.msra.mxu0 0.0
    %314 = vmatpush.msra.mxu0 0.0
    %315 = vmatpush.msra.mxu0 0.0
    %316 = vmatpush.msra.mxu0 0.0
    %317 = vmatpush.msra.mxu0 0.0
    %318 = vmatpush.msra.mxu0 %v291
    %319 = vmatmul.f32.gmra.mxu0 %v298
    %v320 = vpop.f32.mrf.mxu0
    %v321 = vadd.f32 0.0, %v320
    %322 = vmatmul.f32.gmra.mxu0 %v301
    %v323 = vpop.f32.mrf.mxu0
    %v324 = vadd.f32 0.0, %v323
    %325 = vdwg.mxu0
    %326 = vmatpush.msra.mxu0 0.0
    %327 = vmatpush.msra.mxu0 0.0
    %328 = vmatpush.msra.mxu0 0.0
    %329 = vmatpush.msra.mxu0 0.0
    %330 = vmatpush.msra.mxu0 0.0
    %331 = vmatpush.msra.mxu0 0.0
    %332 = vmatpush.msra.mxu0 0.0
    %333 = vmatpush.msra.mxu0 0.0
    %334 = vmatpush.msra.mxu0 0.0
    %335 = vmatpush.msra.mxu0 0.0
    %336 = vmatpush.msra.mxu0 0.0
    %337 = vmatpush.msra.mxu0 0.0
    %338 = vmatpush.msra.mxu0 0.0
    %339 = vmatpush.msra.mxu0 0.0
    %340 = vmatpush.msra.mxu0 0.0
    %341 = vmatpush.msra.mxu0 %v292
    %342 = vmatmul.f32.gmra.mxu0 %v298
    %v343 = vpop.f32.mrf.mxu0
    %v344 = vadd.f32 0.0, %v343
    %345 = vmatmul.f32.gmra.mxu0 %v301
    %v346 = vpop.f32.mrf.mxu0
    %v347 = vadd.f32 0.0, %v346
    %348 = vdwg.mxu0
    %v350 = vsel %vm39, %v293, 0
    %v353 = vsel %vm39, %v294, 0
    %355 = vmatpush.msra.mxu0 0.0
    %356 = vmatpush.msra.mxu0 0.0
    %357 = vmatpush.msra.mxu0 0.0
    %358 = vmatpush.msra.mxu0 0.0
    %359 = vmatpush.msra.mxu0 0.0
    %360 = vmatpush.msra.mxu0 0.0
    %361 = vmatpush.msra.mxu0 0.0
    %362 = vmatpush.msra.mxu0 0.0
    %363 = vmatpush.msra.mxu0 0.0
    %364 = vmatpush.msra.mxu0 0.0
    %365 = vmatpush.msra.mxu0 0.0
    %366 = vmatpush.msra.mxu0 0.0
    %367 = vmatpush.msra.mxu0 0.0
    %368 = vmatpush.msra.mxu0 0.0
    %369 = vmatpush.msra.mxu0 0.0
    %370 = vmatpush.msra.mxu0 %v61
    %371 = vmatmul.f32.gmra.mxu0 %v350
    %v372 = vpop.f32.mrf.mxu0
    %v373 = vadd.f32 %v321, %v372
    %374 = vmatmul.f32.gmra.mxu0 %v353
    %v375 = vpop.f32.mrf.mxu0
    %v376 = vadd.f32 %v324, %v375
    %377 = vdwg.mxu0
    %378 = vmatpush.msra.mxu0 0.0
    %379 = vmatpush.msra.mxu0 0.0
    %380 = vmatpush.msra.mxu0 0.0
    %381 = vmatpush.msra.mxu0 0.0
    %382 = vmatpush.msra.mxu0 0.0
    %383 = vmatpush.msra.mxu0 0.0
    %384 = vmatpush.msra.mxu0 0.0
    %385 = vmatpush.msra.mxu0 0.0
    %386 = vmatpush.msra.mxu0 0.0
    %387 = vmatpush.msra.mxu0 0.0
    %388 = vmatpush.msra.mxu0 0.0
    %389 = vmatpush.msra.mxu0 0.0
    %390 = vmatpush.msra.mxu0 0.0
    %391 = vmatpush.msra.mxu0 0.0
    %392 = vmatpush.msra.mxu0 0.0
    %393 = vmatpush.msra.mxu0 %v81
    %394 = vmatmul.f32.gmra.mxu0 %v350
    %v395 = vpop.f32.mrf.mxu0
    %v396 = vadd.f32 %v344, %v395
    %397 = vmatmul.f32.gmra.mxu0 %v353
    %v398 = vpop.f32.mrf.mxu0
    %v399 = vadd.f32 %v347, %v398
    %400 = vdwg.mxu0
    %v401 = vld [vmem:[%s5] sm:$0xff]
    %v402 = vld [vmem:[%s5 + $0x8] sm:$0xff]
    %404 = vset.pattern.permute.xlu0 0
    %405 = vperm.xlu0 %404, %v401
    %v406 = vpop.permute.xlu0 %405
    %409 = vset.pattern.permute.xlu0 0
    %410 = vperm.xlu0 %409, %v402
    %v411 = vpop.permute.xlu0 %410
    %v413 = vadd.f32 %v373, %v406
    %v414 = vadd.f32 %v396, %v406
    %v415 = vadd.f32 %v376, %v411
    %v416 = vadd.f32 %v399, %v411
    %v417 = vmul.f32 %v413, 0.5
    %v418 = vmul.f32 %v414, 0.5
    %v419 = vmul.f32 %v415, 0.5
    %v420 = vmul.f32 %v416, 0.5
    %v421 = vmul.f32 %v413, 0.70710677
    %v422 = vmul.f32 %v414, 0.70710677
    %v423 = vmul.f32 %v415, 0.70710677
    %v424 = vmul.f32 %v416, 0.70710677
    %v425 = vmul.f32 %v421, %v421
    %v426 = vmin.f32 16.0, %v425
    %v427 = vmul.f32 %v426, 2.1237322e-06
    %v428 = vadd.f32 %v427, 0.00028619796
    %v429 = vmul.f32 %v426, %v428
    %v430 = vadd.f32 %v429, 0.0036580483
    %v431 = vmul.f32 %v426, %v430
    %v432 = vadd.f32 %v431, 0.05243302
    %v433 = vmul.f32 %v426, %v432
    %v434 = vadd.f32 %v433, 0.18741608
    %v435 = vmul.f32 %v426, %v434
    %v436 = vadd.f32 %v435, 1.1283791
    %v437 = vmul.f32 %v421, %v436
    %v438 = vmul.f32 %v426, 3.8918573e-05
    %v439 = vadd.f32 %v438, 0.001143296
    %v440 = vmul.f32 %v426, %v439
    %v441 = vadd.f32 %v440, 0.014752088
    %v442 = vmul.f32 %v426, %v441
    %v443 = vadd.f32 %v442, 0.112945676
    %v444 = vmul.f32 %v426, %v443
    %v445 = vadd.f32 %v444, 0.4994258
    %v446 = vmul.f32 %v426, %v445
    %v447 = vadd.f32 %v446, 1.0
    %v448 = vrcp.pop %v447
    %v449 = vmul.f32 %v447, %v448
    %v450 = vsub.f32 1.0, %v449
    %v451 = vmul.f32 %v448, %v450
    %v452 = vadd.f32 %v448, %v451
    %vm453 = vweird.f32 %v447
    %vm454 = vweird.f32 %v448
    %vm455 = vmor %vm453, %vm454
    %v456 = vsel %vm455, %v448, %v452
    %v457 = vand.u32 2147483647, %v447
    %vm458 = vcmp.eq.f32.partialorder %v457, 8.507059e+37
    %v459 = vand.u32 %v447, 2147483648
    %v460 = vor.u32 1.1754944e-38, %v459
    %v461 = vsel %vm458, %v460, %v456
    %v462 = vmul.f32 %v437, %v461
    %v463 = vmin.f32 %v462, 1.0
    %v464 = vmax.f32 %v463, -1.0
    %v465 = vmul.f32 %v422, %v422
    %v466 = vmin.f32 16.0, %v465
    %v467 = vmul.f32 %v466, 2.1237322e-06
    %v468 = vadd.f32 %v467, 0.00028619796
    %v469 = vmul.f32 %v466, %v468
    %v470 = vadd.f32 %v469, 0.0036580483
    %v471 = vmul.f32 %v466, %v470
    %v472 = vadd.f32 %v471, 0.05243302
    %v473 = vmul.f32 %v466, %v472
    %v474 = vadd.f32 %v473, 0.18741608
    %v475 = vmul.f32 %v466, %v474
    %v476 = vadd.f32 %v475, 1.1283791
    %v477 = vmul.f32 %v422, %v476
    %v478 = vmul.f32 %v466, 3.8918573e-05
    %v479 = vadd.f32 %v478, 0.001143296
    %v480 = vmul.f32 %v466, %v479
    %v481 = vadd.f32 %v480, 0.014752088
    %v482 = vmul.f32 %v466, %v481
    %v483 = vadd.f32 %v482, 0.112945676
    %v484 = vmul.f32 %v466, %v483
    %v485 = vadd.f32 %v484, 0.4994258
    %v486 = vmul.f32 %v466, %v485
    %v487 = vadd.f32 %v486, 1.0
    %v488 = vrcp.pop %v487
    %v489 = vmul.f32 %v487, %v488
    %v490 = vsub.f32 1.0, %v489
    %v491 = vmul.f32 %v488, %v490
    %v492 = vadd.f32 %v488, %v491
    %vm493 = vweird.f32 %v487
    %vm494 = vweird.f32 %v488
    %vm495 = vmor %vm493, %vm494
    %v496 = vsel %vm495, %v488, %v492
    %v497 = vand.u32 2147483647, %v487
    %vm498 = vcmp.eq.f32.partialorder %v497, 8.507059e+37
    %v499 = vand.u32 %v487, 2147483648
    %v500 = vor.u32 1.1754944e-38, %v499
    %v501 = vsel %vm498, %v500, %v496
    %v502 = vmul.f32 %v477, %v501
    %v503 = vmin.f32 %v502, 1.0
    %v504 = vmax.f32 %v503, -1.0
    %v505 = vmul.f32 %v423, %v423
    %v506 = vmin.f32 16.0, %v505
    %v507 = vmul.f32 %v506, 2.1237322e-06
    %v508 = vadd.f32 %v507, 0.00028619796
    %v509 = vmul.f32 %v506, %v508
    %v510 = vadd.f32 %v509, 0.0036580483
    %v511 = vmul.f32 %v506, %v510
    %v512 = vadd.f32 %v511, 0.05243302
    %v513 = vmul.f32 %v506, %v512
    %v514 = vadd.f32 %v513, 0.18741608
    %v515 = vmul.f32 %v506, %v514
    %v516 = vadd.f32 %v515, 1.1283791
    %v517 = vmul.f32 %v423, %v516
    %v518 = vmul.f32 %v506, 3.8918573e-05
    %v519 = vadd.f32 %v518, 0.001143296
    %v520 = vmul.f32 %v506, %v519
    %v521 = vadd.f32 %v520, 0.014752088
    %v522 = vmul.f32 %v506, %v521
    %v523 = vadd.f32 %v522, 0.112945676
    %v524 = vmul.f32 %v506, %v523
    %v525 = vadd.f32 %v524, 0.4994258
    %v526 = vmul.f32 %v506, %v525
    %v527 = vadd.f32 %v526, 1.0
    %v528 = vrcp.pop %v527
    %v529 = vmul.f32 %v527, %v528
    %v530 = vsub.f32 1.0, %v529
    %v531 = vmul.f32 %v528, %v530
    %v532 = vadd.f32 %v528, %v531
    %vm533 = vweird.f32 %v527
    %vm534 = vweird.f32 %v528
    %vm535 = vmor %vm533, %vm534
    %v536 = vsel %vm535, %v528, %v532
    %v537 = vand.u32 2147483647, %v527
    %vm538 = vcmp.eq.f32.partialorder %v537, 8.507059e+37
    %v539 = vand.u32 %v527, 2147483648
    %v540 = vor.u32 1.1754944e-38, %v539
    %v541 = vsel %vm538, %v540, %v536
    %v542 = vmul.f32 %v517, %v541
    %v543 = vmin.f32 %v542, 1.0
    %v544 = vmax.f32 %v543, -1.0
    %v545 = vmul.f32 %v424, %v424
    %v546 = vmin.f32 16.0, %v545
    %v547 = vmul.f32 %v546, 2.1237322e-06
    %v548 = vadd.f32 %v547, 0.00028619796
    %v549 = vmul.f32 %v546, %v548
    %v550 = vadd.f32 %v549, 0.0036580483
    %v551 = vmul.f32 %v546, %v550
    %v552 = vadd.f32 %v551, 0.05243302
    %v553 = vmul.f32 %v546, %v552
    %v554 = vadd.f32 %v553, 0.18741608
    %v555 = vmul.f32 %v546, %v554
    %v556 = vadd.f32 %v555, 1.1283791
    %v557 = vmul.f32 %v424, %v556
    %v558 = vmul.f32 %v546, 3.8918573e-05
    %v559 = vadd.f32 %v558, 0.001143296
    %v560 = vmul.f32 %v546, %v559
    %v561 = vadd.f32 %v560, 0.014752088
    %v562 = vmul.f32 %v546, %v561
    %v563 = vadd.f32 %v562, 0.112945676
    %v564 = vmul.f32 %v546, %v563
    %v565 = vadd.f32 %v564, 0.4994258
    %v566 = vmul.f32 %v546, %v565
    %v567 = vadd.f32 %v566, 1.0
    %v568 = vrcp.pop %v567
    %v569 = vmul.f32 %v567, %v568
    %v570 = vsub.f32 1.0, %v569
    %v571 = vmul.f32 %v568, %v570
    %v572 = vadd.f32 %v568, %v571
    %vm573 = vweird.f32 %v567
    %vm574 = vweird.f32 %v568
    %vm575 = vmor %vm573, %vm574
    %v576 = vsel %vm575, %v568, %v572
    %v577 = vand.u32 2147483647, %v567
    %vm578 = vcmp.eq.f32.partialorder %v577, 8.507059e+37
    %v579 = vand.u32 %v567, 2147483648
    %v580 = vor.u32 1.1754944e-38, %v579
    %v581 = vsel %vm578, %v580, %v576
    %v582 = vmul.f32 %v557, %v581
    %v583 = vmin.f32 %v582, 1.0
    %v584 = vmax.f32 %v583, -1.0
    %v585 = vadd.f32 %v464, 1.0
    %v586 = vadd.f32 %v504, 1.0
    %v587 = vadd.f32 %v544, 1.0
    %v588 = vadd.f32 %v584, 1.0
    %v589 = vmul.f32 %v417, %v585
    %v590 = vmul.f32 %v418, %v586
    %v591 = vmul.f32 %v419, %v587
    %v592 = vmul.f32 %v420, %v588
    %v593 = vld [vmem:[%s6] sm:$0xff]
    %v594 = vld [vmem:[%s7] sm:$0xff]
    %596 = vset.pattern.permute.xlu0 0
    %597 = vperm.xlu0 %596, %v594
    %v598 = vpop.permute.xlu0 %597
    %vm600 = vcmask 130048
    %v602 = vsel %vm600, %v593, 0
    %604 = vmatpush.msra.mxu0 0.0
    %605 = vmatpush.msra.mxu0 0.0
    %606 = vmatpush.msra.mxu0 0.0
    %607 = vmatpush.msra.mxu0 0.0
    %608 = vmatpush.msra.mxu0 0.0
    %609 = vmatpush.msra.mxu0 0.0
    %610 = vmatpush.msra.mxu0 0.0
    %611 = vmatpush.msra.mxu0 0.0
    %612 = vmatpush.msra.mxu0 0.0
    %613 = vmatpush.msra.mxu0 0.0
    %614 = vmatpush.msra.mxu0 0.0
    %615 = vmatpush.msra.mxu0 0.0
    %616 = vmatpush.msra.mxu0 0.0
    %617 = vmatpush.msra.mxu0 0.0
    %618 = vmatpush.msra.mxu0 %v591
    %619 = vmatpush.msra.mxu0 %v589
    %620 = vmatmul.f32.gmra.mxu0 %v602
    %v621 = vpop.f32.mrf.mxu0
    %v622 = vadd.f32 %v598, %v621
    %623 = vdwg.mxu0
    %624 = vmatpush.msra.mxu0 0.0
    %625 = vmatpush.msra.mxu0 0.0
    %626 = vmatpush.msra.mxu0 0.0
    %627 = vmatpush.msra.mxu0 0.0
    %628 = vmatpush.msra.mxu0 0.0
    %629 = vmatpush.msra.mxu0 0.0
    %630 = vmatpush.msra.mxu0 0.0
    %631 = vmatpush.msra.mxu0 0.0
    %632 = vmatpush.msra.mxu0 0.0
    %633 = vmatpush.msra.mxu0 0.0
    %634 = vmatpush.msra.mxu0 0.0
    %635 = vmatpush.msra.mxu0 0.0
    %636 = vmatpush.msra.mxu0 0.0
    %637 = vmatpush.msra.mxu0 0.0
    %638 = vmatpush.msra.mxu0 %v592
    %639 = vmatpush.msra.mxu0 %v590
    %640 = vmatmul.f32.gmra.mxu0 %v602
    %v641 = vpop.f32.mrf.mxu0
    %v642 = vadd.f32 %v598, %v641
    %643 = vdwg.mxu0
    %v644 = vadd.f32 %v622, %v30
    %v645 = vadd.f32 %v642, %v31
    %646 = vst [vmem:[#allocation2] sm:$0xff] %v644
    %647 = vst [vmem:[#allocation2 + $0x8] sm:$0xff] %v645
    // Predicated region
    $region34: #{tpu_custom_call.1} parent=1 // pred_check
      _
    $region35: #{tpu_custom_call.1} parent=1 // pred_check_branch
      %649 = sbr.rel (0) target = $region37
    $region36: #{tpu_custom_call.1} parent=1 // pred_region
      %651 = vsyncadd [#allocation3], 0
      %s653 = sshll.u32 [#allocation2], 4
      %s654 = int_to_ptr.vmem [resolvable:$true] %s653
      %s655 = sshll.u32 %s8, 4
      %s656 = int_to_ptr.hbm [resolvable:$true] %s655
      %658 = dma.vmem_to_hbm [thread:$0]  %s654, 256, %s656, [#allocation3]
    $region37: #{tpu_custom_call.1} parent=1 // pred_fallthru
      _
    // Predicated region
    $region38: #{tpu_custom_call.1} parent=1 // pred_check
      _
    $region39: #{tpu_custom_call.1} parent=1 // pred_check_branch
      %660 = sbr.rel (0) target = $region41
    $region40: #{tpu_custom_call.1} parent=1 // pred_region
      %662 = dma.done [#allocation3], 256
    $region41: #{tpu_custom_call.1} parent=1 // pred_fallthru
      _
    %663 = vsyncpa [#allocation3], 1

</llo_original>
